<compile_context>
chip_gen: v6e
topology: v6e:2x2x1
jax: 0.10.0
libtpu: 0.0.40
codegen_flags: <defaults>
</compile_context>

<pallas_src>
import jax
import jax.numpy as jnp
import numpy as np
from jax.experimental import pallas as pl
from jax.experimental.pallas import tpu as pltpu

_MIB = 1024 * 1024


def _round_up(x: int, m: int) -> int:
    return ((x + m - 1) // m) * m


def _tile_and_pad(dim: int, cap: int, align: int):
    """Pick (tile, padded_dim): tile is a multiple of `align`, <= cap, divides
    padded_dim, and padded_dim stays as close to `dim` as possible."""
    base = _round_up(dim, align)
    if base <= cap:
        return base, base
    # Largest multiple of `align` that exactly divides the minimally padded dim.
    best = align
    t = align
    while t <= cap:
        if base % t == 0:
            best = t
        t += align
    if best >= min(cap, 256):
        return best, base
    # All exact divisors are small; allow up to ~12.5% zero padding for a
    # substantially larger tile.
    for t in range(cap, best, -align):
        p = _round_up(dim, t)
        if (p - base) * 8 <= p:
            return t, p
    return best, base


def _vmem_capacity_bytes() -> int:
    try:
        info = pltpu.get_tpu_info()
        for attr in ("vmem_capacity_bytes", "vmem_bytes"):
            v = getattr(info, attr, None)
            if v:
                return int(v)
    except Exception:
        pass
    try:
        kind = jax.devices()[0].device_kind.lower()
        if "v7" in kind:
            return 64 * _MIB
    except Exception:
        pass
    return 128 * _MIB


def _kernel_config():
    """Per-generation tile caps and scoped-VMEM limit."""
    vmem = _vmem_capacity_bytes()
    if vmem <= 64 * _MIB:
        # v7x-class: 64 MiB per TensorCore -> smaller N tile, leave headroom.
        return dict(tm_cap=512, tn_cap=768, tk_cap=1024, vmem_limit=48 * _MIB)
    # v5e / v6e: 128 MiB VMEM.
    return dict(tm_cap=512, tn_cap=1024, tk_cap=1024, vmem_limit=100 * _MIB)


def _complex_linear_kernel(xr_ref, xi_ref, wr_ref, wi_ref, br_ref, bi_ref,
                           ore_ref, oim_ref):
    k = pl.program_id(2)

    @pl.when(k == 0)
    def _init():
        # Folded biases: real output gets (b_r - b_i), imag gets (b_r + b_i).
        ore_ref[...] = jnp.broadcast_to(br_ref[...], ore_ref.shape)
        oim_ref[...] = jnp.broadcast_to(bi_ref[...], oim_ref.shape)

    xr = xr_ref[...]
    xi = xi_ref[...]
    wr = wr_ref[...]
    wi = wi_ref[...]

    # Gauss / Karatsuba 3-matmul complex product, f32 accumulation directly in
    # the VMEM-resident output tiles (one f32 temporary tile live at a time):
    #   real += xr@Wr - xi@Wi
    #   imag += (xr+xi)@(Wr+Wi) - xr@Wr - xi@Wi
    t = jnp.dot(xr + xi, wr + wi, preferred_element_type=jnp.float32)
    oim_ref[...] += t
    t = jnp.dot(xr, wr, preferred_element_type=jnp.float32)
    ore_ref[...] += t
    oim_ref[...] -= t
    t = jnp.dot(xi, wi, preferred_element_type=jnp.float32)
    ore_ref[...] -= t
    oim_ref[...] -= t


def prepare_complex_linear_params(w_real, w_imag, b_real, b_imag,
                                  *, compute_dtype=jnp.bfloat16):
    """One-time parameter prep (hoisted out of the per-call path).

    w_real/w_imag: (Fout, Fin) as in nn.Linear.  Returns kernel-ready,
    transposed, minimally padded, bf16 weights and folded f32 bias rows.
    """
    fout, fin = w_real.shape
    cfg = _kernel_config()
    tk, kp = _tile_and_pad(fin, cfg["tk_cap"], 128)
    tn, npad = _tile_and_pad(fout, cfg["tn_cap"], 128)

    def prep_w(w):
        wt = w.T.astype(compute_dtype)                       # (Fin, Fout)
        return jnp.pad(wt, ((0, kp - fin), (0, npad - fout)))

    br_eff = jnp.pad((b_real - b_imag).astype(jnp.float32), (0, npad - fout))
    bi_eff = jnp.pad((b_real + b_imag).astype(jnp.float32), (0, npad - fout))

    return dict(
        wr_t=prep_w(w_real), wi_t=prep_w(w_imag),
        br=br_eff.reshape(1, npad), bi=bi_eff.reshape(1, npad),
        fin=fin, fout=fout, tk=tk, tn=tn,
        tm_cap=cfg["tm_cap"], vmem_limit=cfg["vmem_limit"],
        compute_dtype=compute_dtype,
    )


def complex_linear(x, params):
    """x: (..., Fin) complex64  ->  (..., Fout) complex64."""
    *lead, fin = x.shape
    assert fin == params["fin"], "input feature dim mismatch"
    fout = params["fout"]
    wr_t, wi_t = params["wr_t"], params["wi_t"]
    br, bi = params["br"], params["bi"]
    kp, npad = wr_t.shape
    tk, tn = params["tk"], params["tn"]
    cdt = params["compute_dtype"]

    # Cast BEFORE padding -> no padded f32 activation copy in HBM.
    xr = jnp.real(x).reshape(-1, fin).astype(cdt)
    xi = jnp.imag(x).reshape(-1, fin).astype(cdt)
    m = xr.shape[0]
    tm, mp = _tile_and_pad(m, params["tm_cap"], 16)
    if mp != m or kp != fin:
        pad = ((0, mp - m), (0, kp - fin))
        xr = jnp.pad(xr, pad)
        xi = jnp.pad(xi, pad)

    grid = (mp // tm, npad // tn, kp // tk)

    isz = jnp.dtype(cdt).itemsize
    flops = 6 * mp * kp * npad                      # 3 matmuls, 2 flops / MAC
    bytes_accessed = (2 * mp * kp * isz + 2 * kp * npad * isz
                      + 2 * npad * 4 + 2 * mp * npad * 4)

    out_re, out_im = pl.pallas_call(
        _complex_linear_kernel,
        out_shape=(jax.ShapeDtypeStruct((mp, npad), jnp.float32),
                   jax.ShapeDtypeStruct((mp, npad), jnp.float32)),
        grid_spec=pltpu.PrefetchScalarGridSpec(
            num_scalar_prefetch=0,
            grid=grid,
            in_specs=[
                pl.BlockSpec((tm, tk), lambda i, j, k: (i, k)),   # x real
                pl.BlockSpec((tm, tk), lambda i, j, k: (i, k)),   # x imag
                pl.BlockSpec((tk, tn), lambda i, j, k: (k, j)),   # Wr^T
                pl.BlockSpec((tk, tn), lambda i, j, k: (k, j)),   # Wi^T
                pl.BlockSpec((1, tn), lambda i, j, k: (0, j)),    # b_r - b_i
                pl.BlockSpec((1, tn), lambda i, j, k: (0, j)),    # b_r + b_i
            ],
            out_specs=[
                pl.BlockSpec((tm, tn), lambda i, j, k: (i, j)),
                pl.BlockSpec((tm, tn), lambda i, j, k: (i, j)),
            ],
        ),
        compiler_params=pltpu.CompilerParams(
            dimension_semantics=("parallel", "parallel", "arbitrary"),
            vmem_limit_bytes=params["vmem_limit"],
        ),
        cost_estimate=pl.CostEstimate(flops=flops, transcendentals=0,
                                      bytes_accessed=bytes_accessed),
    )(xr, xi, wr_t, wi_t, br, bi)

    out_re = out_re[:m, :fout].reshape(*lead, fout)
    out_im = out_im[:m, :fout].reshape(*lead, fout)
    return jax.lax.complex(out_re, out_im)


def _reference(x, w_real, w_imag, b_real, b_imag):
    """Pure-JAX f32 reference matching the PyTorch module exactly."""
    xr = jnp.real(x)
    xi = jnp.imag(x)
    real_out = (xr @ w_real.T + b_real) - (xi @ w_imag.T + b_imag)
    imag_out = (xr @ w_imag.T + b_imag) + (xi @ w_real.T + b_real)
    return jax.lax.complex(real_out, imag_out)


def _run_case(key, batch_shape, in_features, out_features):
    k_xr, k_xi, k_wr, k_wi, k_br, k_bi = jax.random.split(key, 6)

    x = jax.lax.complex(
        jax.random.normal(k_xr, (*batch_shape, in_features), dtype=jnp.float32),
        jax.random.normal(k_xi, (*batch_shape, in_features), dtype=jnp.float32),
    )

    bound = 1.0 / np.sqrt(in_features)  # nn.Linear init bounds
    w_real = jax.random.uniform(k_wr, (out_features, in_features), jnp.float32, -bound, bound)
    w_imag = jax.random.uniform(k_wi, (out_features, in_features), jnp.float32, -bound, bound)
    b_real = jax.random.uniform(k_br, (out_features,), jnp.float32, -bound, bound)
    b_imag = jax.random.uniform(k_bi, (out_features,), jnp.float32, -bound, bound)

    params = prepare_complex_linear_params(w_real, w_imag, b_real, b_imag)

    out = complex_linear(x, params)
    out = jax.block_until_ready(out)

    ref = _reference(x, w_real, w_imag, b_real, b_imag)
    assert out.shape == (*batch_shape, out_features)
    assert out.dtype == jnp.complex64
    # bf16 operands (incl. the Gauss-trick operand sums) with f32 accumulation.
    np.testing.assert_allclose(np.asarray(out), np.asarray(ref), rtol=3e-2, atol=3e-2)


if __name__ == "__main__":
    root = jax.random.PRNGKey(0)
    k0, k1, k2 = jax.random.split(root, 3)

    # Small case consistent with the module (batch=(2, 8), Fin=32, Fout=16);
    # exercises minimal K/N zero-padding (grid = (1, 1, 1)).
    _run_case(k0, batch_shape=(2, 8), in_features=32, out_features=16)

    # Ragged K/N with no over-padding (fin=640 stays 640, fout=272 -> 384).
    _run_case(k1, batch_shape=(3, 5), in_features=640, out_features=272)

    # K-tiled accumulation path (fin=1536 -> tk=768, two k steps).
    _run_case(k2, batch_shape=(2, 8), in_features=1536, out_features=272)

    print("KERNEL_OK")
</pallas_src>

<mosaic_0001>
module attributes {stable_mosaic.version = 11 : i64} {
  func.func @_complex_linear_kernel(%arg0: i32, %arg1: i32, %arg2: i32, %arg3: memref<16x128xbf16, #tpu.memory_space<vmem>>, %arg4: memref<16x128xbf16, #tpu.memory_space<vmem>>, %arg5: memref<128x128xbf16, #tpu.memory_space<vmem>>, %arg6: memref<128x128xbf16, #tpu.memory_space<vmem>>, %arg7: memref<1x128xf32, #tpu.memory_space<vmem>>, %arg8: memref<1x128xf32, #tpu.memory_space<vmem>>, %arg9: memref<16x128xf32, #tpu.memory_space<vmem>>, %arg10: memref<16x128xf32, #tpu.memory_space<vmem>>) attributes {dimension_semantics = [#tpu.dimension_semantics<parallel>, #tpu.dimension_semantics<parallel>, #tpu.dimension_semantics<arbitrary>], iteration_bounds = array<i64: 1, 1, 1>, scalar_prefetch = 0 : i64, scratch_operands = 0 : i64, tpu.core_type = #tpu.core_type<tc>, window_params = [{transform_indices = @transform_0, window_bounds = array<i64: 16, 128>}, {transform_indices = @transform_1, window_bounds = array<i64: 16, 128>}, {transform_indices = @transform_2, window_bounds = array<i64: 128, 128>}, {transform_indices = @transform_3, window_bounds = array<i64: 128, 128>}, {transform_indices = @transform_4, window_bounds = array<i64: 1, 128>}, {transform_indices = @transform_5, window_bounds = array<i64: 1, 128>}, {transform_indices = @transform_6, window_bounds = array<i64: 16, 128>}, {transform_indices = @transform_7, window_bounds = array<i64: 16, 128>}]} {
    %c0_i32 = arith.constant 0 : i32
    %0 = arith.cmpi eq, %arg2, %c0_i32 : i32
    %1 = arith.extui %0 : i1 to i32
    %c0_i32_0 = arith.constant 0 : i32
    %2 = arith.cmpi ne, %1, %c0_i32_0 : i32
    scf.if %2 {
      %c0_30 = arith.constant 0 : index
      %c0_31 = arith.constant 0 : index
      %27 = vector.load %arg7[%c0_30, %c0_31] : memref<1x128xf32, #tpu.memory_space<vmem>>, vector<1x128xf32>
      %28 = vector.shape_cast %27 : vector<1x128xf32> to vector<1x128xf32>
      %29 = vector.broadcast %28 : vector<1x128xf32> to vector<16x128xf32>
      %c0_32 = arith.constant 0 : index
      %c0_33 = arith.constant 0 : index
      %30 = vector.load %arg9[%c0_32, %c0_33] : memref<16x128xf32, #tpu.memory_space<vmem>>, vector<16x128xf32>
      tpu.vector_store %arg9[%c0_32, %c0_33], %29 {strides = array<i32>} : memref<16x128xf32, #tpu.memory_space<vmem>>, vector<16x128xf32>,
      %c0_34 = arith.constant 0 : index
      %c0_35 = arith.constant 0 : index
      %31 = vector.load %arg8[%c0_34, %c0_35] : memref<1x128xf32, #tpu.memory_space<vmem>>, vector<1x128xf32>
      %32 = vector.shape_cast %31 : vector<1x128xf32> to vector<1x128xf32>
      %33 = vector.broadcast %32 : vector<1x128xf32> to vector<16x128xf32>
      %c0_36 = arith.constant 0 : index
      %c0_37 = arith.constant 0 : index
      %34 = vector.load %arg10[%c0_36, %c0_37] : memref<16x128xf32, #tpu.memory_space<vmem>>, vector<16x128xf32>
      tpu.vector_store %arg10[%c0_36, %c0_37], %33 {strides = array<i32>} : memref<16x128xf32, #tpu.memory_space<vmem>>, vector<16x128xf32>,
    } else {
    }
    %c0 = arith.constant 0 : index
    %c0_1 = arith.constant 0 : index
    %3 = vector.load %arg3[%c0, %c0_1] : memref<16x128xbf16, #tpu.memory_space<vmem>>, vector<16x128xbf16>
    %c0_2 = arith.constant 0 : index
    %c0_3 = arith.constant 0 : index
    %4 = vector.load %arg4[%c0_2, %c0_3] : memref<16x128xbf16, #tpu.memory_space<vmem>>, vector<16x128xbf16>
    %c0_4 = arith.constant 0 : index
    %c0_5 = arith.constant 0 : index
    %5 = vector.load %arg5[%c0_4, %c0_5] : memref<128x128xbf16, #tpu.memory_space<vmem>>, vector<128x128xbf16>
    %c0_6 = arith.constant 0 : index
    %c0_7 = arith.constant 0 : index
    %6 = vector.load %arg6[%c0_6, %c0_7] : memref<128x128xbf16, #tpu.memory_space<vmem>>, vector<128x128xbf16>
    %7 = arith.addf %3, %4 : vector<16x128xbf16>
    %8 = arith.addf %5, %6 : vector<128x128xbf16>
    %cst = arith.constant dense<0.000000e+00> : vector<16x128xf32>
    %9 = tpu.matmul %7, %8, %cst {dimension_numbers = #tpu.dot_dimension_numbers<[1], [0], [0], [1], [0, 0, 1, 1], [], []>} : vector<16x128xbf16>, vector<128x128xbf16>, vector<16x128xf32> -> vector<16x128xf32>
    %c0_8 = arith.constant 0 : index
    %c0_9 = arith.constant 0 : index
    %10 = vector.load %arg10[%c0_8, %c0_9] : memref<16x128xf32, #tpu.memory_space<vmem>>, vector<16x128xf32>
    %11 = arith.addf %10, %9 : vector<16x128xf32>
    %c0_10 = arith.constant 0 : index
    %c0_11 = arith.constant 0 : index
    %12 = vector.load %arg10[%c0_10, %c0_11] : memref<16x128xf32, #tpu.memory_space<vmem>>, vector<16x128xf32>
    tpu.vector_store %arg10[%c0_10, %c0_11], %11 {strides = array<i32>} : memref<16x128xf32, #tpu.memory_space<vmem>>, vector<16x128xf32>,
    %cst_12 = arith.constant dense<0.000000e+00> : vector<16x128xf32>
    %13 = tpu.matmul %3, %5, %cst_12 {dimension_numbers = #tpu.dot_dimension_numbers<[1], [0], [0], [1], [0, 0, 1, 1], [], []>} : vector<16x128xbf16>, vector<128x128xbf16>, vector<16x128xf32> -> vector<16x128xf32>
    %c0_13 = arith.constant 0 : index
    %c0_14 = arith.constant 0 : index
    %14 = vector.load %arg9[%c0_13, %c0_14] : memref<16x128xf32, #tpu.memory_space<vmem>>, vector<16x128xf32>
    %15 = arith.addf %14, %13 : vector<16x128xf32>
    %c0_15 = arith.constant 0 : index
    %c0_16 = arith.constant 0 : index
    %16 = vector.load %arg9[%c0_15, %c0_16] : memref<16x128xf32, #tpu.memory_space<vmem>>, vector<16x128xf32>
    tpu.vector_store %arg9[%c0_15, %c0_16], %15 {strides = array<i32>} : memref<16x128xf32, #tpu.memory_space<vmem>>, vector<16x128xf32>,
    %c0_17 = arith.constant 0 : index
    %c0_18 = arith.constant 0 : index
    %17 = vector.load %arg10[%c0_17, %c0_18] : memref<16x128xf32, #tpu.memory_space<vmem>>, vector<16x128xf32>
    %18 = arith.subf %17, %13 : vector<16x128xf32>
    %c0_19 = arith.constant 0 : index
    %c0_20 = arith.constant 0 : index
    %19 = vector.load %arg10[%c0_19, %c0_20] : memref<16x128xf32, #tpu.memory_space<vmem>>, vector<16x128xf32>
    tpu.vector_store %arg10[%c0_19, %c0_20], %18 {strides = array<i32>} : memref<16x128xf32, #tpu.memory_space<vmem>>, vector<16x128xf32>,
    %cst_21 = arith.constant dense<0.000000e+00> : vector<16x128xf32>
    %20 = tpu.matmul %4, %6, %cst_21 {dimension_numbers = #tpu.dot_dimension_numbers<[1], [0], [0], [1], [0, 0, 1, 1], [], []>} : vector<16x128xbf16>, vector<128x128xbf16>, vector<16x128xf32> -> vector<16x128xf32>
    %c0_22 = arith.constant 0 : index
    %c0_23 = arith.constant 0 : index
    %21 = vector.load %arg9[%c0_22, %c0_23] : memref<16x128xf32, #tpu.memory_space<vmem>>, vector<16x128xf32>
    %22 = arith.subf %21, %20 : vector<16x128xf32>
    %c0_24 = arith.constant 0 : index
    %c0_25 = arith.constant 0 : index
    %23 = vector.load %arg9[%c0_24, %c0_25] : memref<16x128xf32, #tpu.memory_space<vmem>>, vector<16x128xf32>
    tpu.vector_store %arg9[%c0_24, %c0_25], %22 {strides = array<i32>} : memref<16x128xf32, #tpu.memory_space<vmem>>, vector<16x128xf32>,
    %c0_26 = arith.constant 0 : index
    %c0_27 = arith.constant 0 : index
    %24 = vector.load %arg10[%c0_26, %c0_27] : memref<16x128xf32, #tpu.memory_space<vmem>>, vector<16x128xf32>
    %25 = arith.subf %24, %20 : vector<16x128xf32>
    %c0_28 = arith.constant 0 : index
    %c0_29 = arith.constant 0 : index
    %26 = vector.load %arg10[%c0_28, %c0_29] : memref<16x128xf32, #tpu.memory_space<vmem>>, vector<16x128xf32>
    tpu.vector_store %arg10[%c0_28, %c0_29], %25 {strides = array<i32>} : memref<16x128xf32, #tpu.memory_space<vmem>>, vector<16x128xf32>,
    return
  }
  func.func @transform_0(%arg0: i32, %arg1: i32, %arg2: i32) -> (i32, i32) {
    %c0_i32 = arith.constant 0 : i32
    return %arg0, %arg2 : i32, i32
  }
  func.func @transform_1(%arg0: i32, %arg1: i32, %arg2: i32) -> (i32, i32) {
    %c0_i32 = arith.constant 0 : i32
    return %arg0, %arg2 : i32, i32
  }
  func.func @transform_2(%arg0: i32, %arg1: i32, %arg2: i32) -> (i32, i32) {
    %c0_i32 = arith.constant 0 : i32
    return %arg2, %arg1 : i32, i32
  }
  func.func @transform_3(%arg0: i32, %arg1: i32, %arg2: i32) -> (i32, i32) {
    %c0_i32 = arith.constant 0 : i32
    return %arg2, %arg1 : i32, i32
  }
  func.func @transform_4(%arg0: i32, %arg1: i32, %arg2: i32) -> (i32, i32) {
    %c0_i32 = arith.constant 0 : i32
    %c0_i32_0 = arith.constant 0 : i32
    return %c0_i32, %arg1 : i32, i32
  }
  func.func @transform_5(%arg0: i32, %arg1: i32, %arg2: i32) -> (i32, i32) {
    %c0_i32 = arith.constant 0 : i32
    %c0_i32_0 = arith.constant 0 : i32
    return %c0_i32, %arg1 : i32, i32
  }
  func.func @transform_6(%arg0: i32, %arg1: i32, %arg2: i32) -> (i32, i32) {
    %c0_i32 = arith.constant 0 : i32
    return %arg0, %arg1 : i32, i32
  }
  func.func @transform_7(%arg0: i32, %arg1: i32, %arg2: i32) -> (i32, i32) {
    %c0_i32 = arith.constant 0 : i32
    return %arg0, %arg1 : i32, i32
  }
}

</mosaic_0001>

<llo_original>
// kernel: tpu_custom_call.1
$region0: #{tpu_custom_call.1}
  #allocation0 [shape = 'u32[]', space=smem, size = 0x4, offset = 0x4, fixed_abs, tag = 'smem constant byte address 0x4 - core index']
  #allocation1 [shape = 'u32[144,128]{1,0:T(1,128)}', space=vmem, size = 0x12000, scoped, tag = 'internal scratch']
  %s0 = inlined_call_operand.hbm [shape: bf16[16,128], index: 0, kind: input, shape index: {}]
  %s1 = inlined_call_operand.hbm [shape: bf16[16,128], index: 1, kind: input, shape index: {}]
  %s2 = inlined_call_operand.hbm [shape: bf16[128,128], index: 2, kind: input, shape index: {}]
  %s3 = inlined_call_operand.hbm [shape: bf16[128,128], index: 3, kind: input, shape index: {}]
  %s4 = inlined_call_operand.vmem [shape: f32[1,128], index: 4, kind: input, shape index: {}]
  %s5 = inlined_call_operand.vmem [shape: f32[1,128], index: 5, kind: input, shape index: {}]
  %s6 = inlined_call_operand.hbm [shape: f32[16,128], index: 6, kind: output, shape index: {0}]
  %s7 = inlined_call_operand.hbm [shape: f32[16,128], index: 7, kind: output, shape index: {1}]
  %8 = xla_tuple %s6, %s7
  %s9 = sld [smem:[#allocation0]]
  $region62: #{tpu_custom_call.1} parent=0
    _
  %s11 = ssub.s32 1, %s9
  %s12 = scalar_select 0, %s11, %s9
  $region1: #{tpu_custom_call.1} parent=0
    #allocation2 [shape = 'u8[4096]{0}', space=vmem, size = 0x1000, scoped, tag = 'input window, operand 0, single buffered']
    #allocation3 [shape = 's32[1]{0}', space=sflag, size = 0x4, scoped, tag = 'scoped memory for tpu_custom_call.1']
    #allocation4 [shape = 's32[1]{0}', space=sflag, size = 0x4, scoped, tag = 'scoped memory for tpu_custom_call.1']
    #allocation5 [shape = 'u8[4096]{0}', space=vmem, size = 0x1000, scoped, tag = 'input window, operand 1, single buffered']
    #allocation6 [shape = 's32[1]{0}', space=sflag, size = 0x4, scoped, tag = 'scoped memory for tpu_custom_call.1']
    #allocation7 [shape = 'u8[32768]{0}', space=vmem, size = 0x8000, scoped, tag = 'input window, operand 2, single buffered']
    #allocation8 [shape = 'u8[32768]{0}', space=vmem, size = 0x8000, scoped, tag = 'input window, operand 3, single buffered']
    #allocation9 [shape = 's32[1]{0}', space=sflag, size = 0x4, scoped, tag = 'scoped memory for tpu_custom_call.1']
    #allocation10 [shape = 'u8[8192]{0}', space=vmem, size = 0x2000, scoped, tag = 'output window, operand 0, single buffered']
    #allocation11 [shape = 'u8[8192]{0}', space=vmem, size = 0x2000, scoped, tag = 'output window, operand 1, single buffered']
    #allocation12 [shape = 's32[1]{0}', space=sflag, size = 0x4, scoped, tag = 'scoped memory for tpu_custom_call.1']
    %13 = vsyncpa [#allocation3], 0
    %14 = vsyncpa [#allocation6], 0
    %15 = vsyncpa [#allocation9], 0
    %16 = vsyncpa [#allocation4], 0
    %17 = vsyncpa [#allocation12], 0
    // Predicated region
    $region2: #{tpu_custom_call.1} parent=1 // pred_check
      _
    $region3: #{tpu_custom_call.1} parent=1 // pred_check_branch
      %19 = sbr.rel (0) target = $region5
    $region4: #{tpu_custom_call.1} parent=1 // pred_region
      %s21 = ssub.s32 128, 128
      %22 = vsyncadd [#allocation3], %s21
      %s23 = sshll.u32 [#allocation2], 4
      %s24 = int_to_ptr.vmem [resolvable:$true] %s23
      %29 = dma.hbm_to_vmem [thread:$0]  %s0, 128, %s24, [#allocation3], 64, 64, 4
    $region5: #{tpu_custom_call.1} parent=1 // pred_fallthru
      _
    // Predicated region
    $region6: #{tpu_custom_call.1} parent=1 // pred_check
      _
    $region7: #{tpu_custom_call.1} parent=1 // pred_check_branch
      %31 = sbr.rel (0) target = $region9
    $region8: #{tpu_custom_call.1} parent=1 // pred_region
      %s33 = ssub.s32 128, 128
      %34 = vsyncadd [#allocation6], %s33
      %s35 = sshll.u32 [#allocation5], 4
      %s36 = int_to_ptr.vmem [resolvable:$true] %s35
      %41 = dma.hbm_to_vmem [thread:$0]  %s1, 128, %s36, [#allocation6], 64, 64, 4
    $region9: #{tpu_custom_call.1} parent=1 // pred_fallthru
      _
    // Predicated region
    $region10: #{tpu_custom_call.1} parent=1 // pred_check
      _
    $region11: #{tpu_custom_call.1} parent=1 // pred_check_branch
      %43 = sbr.rel (0) target = $region13
    $region12: #{tpu_custom_call.1} parent=1 // pred_region
      %s45 = ssub.s32 1024, 1024
      %46 = vsyncadd [#allocation6], %s45
      %s47 = sshll.u32 [#allocation7], 4
      %s48 = int_to_ptr.vmem [resolvable:$true] %s47
      %53 = dma.hbm_to_vmem [thread:$0]  %s2, 1024, %s48, [#allocation6], 64, 64, 4
    $region13: #{tpu_custom_call.1} parent=1 // pred_fallthru
      _
    // Predicated region
    $region14: #{tpu_custom_call.1} parent=1 // pred_check
      _
    $region15: #{tpu_custom_call.1} parent=1 // pred_check_branch
      %55 = sbr.rel (0) target = $region17
    $region16: #{tpu_custom_call.1} parent=1 // pred_region
      %s57 = ssub.s32 1024, 1024
      %58 = vsyncadd [#allocation9], %s57
      %s59 = sshll.u32 [#allocation8], 4
      %s60 = int_to_ptr.vmem [resolvable:$true] %s59
      %65 = dma.hbm_to_vmem [thread:$0]  %s3, 1024, %s60, [#allocation9], 64, 64, 4
    $region17: #{tpu_custom_call.1} parent=1 // pred_fallthru
      _
    // Predicated region
    $region18: #{tpu_custom_call.1} parent=1 // pred_check
      _
    $region19: #{tpu_custom_call.1} parent=1 // pred_check_branch
      %67 = sbr.rel (0) target = $region21
    $region20: #{tpu_custom_call.1} parent=1 // pred_region
      _
    $region21: #{tpu_custom_call.1} parent=1 // pred_fallthru
      _
    // Predicated region
    $region22: #{tpu_custom_call.1} parent=1 // pred_check
      _
    $region23: #{tpu_custom_call.1} parent=1 // pred_check_branch
      %69 = sbr.rel (0) target = $region25
    $region24: #{tpu_custom_call.1} parent=1 // pred_region
      _
    $region25: #{tpu_custom_call.1} parent=1 // pred_fallthru
      _
    // Predicated region
    $region26: #{tpu_custom_call.1} parent=1 // pred_check
      _
    $region27: #{tpu_custom_call.1} parent=1 // pred_check_branch
      %71 = sbr.rel (0) target = $region29
    $region28: #{tpu_custom_call.1} parent=1 // pred_region
      %72 = dma.done [#allocation3], 128
    $region29: #{tpu_custom_call.1} parent=1 // pred_fallthru
      _
    // Predicated region
    $region30: #{tpu_custom_call.1} parent=1 // pred_check
      _
    $region31: #{tpu_custom_call.1} parent=1 // pred_check_branch
      %74 = sbr.rel (0) target = $region33
    $region32: #{tpu_custom_call.1} parent=1 // pred_region
      %75 = dma.done [#allocation6], 128
    $region33: #{tpu_custom_call.1} parent=1 // pred_fallthru
      _
    // Predicated region
    $region34: #{tpu_custom_call.1} parent=1 // pred_check
      _
    $region35: #{tpu_custom_call.1} parent=1 // pred_check_branch
      %77 = sbr.rel (0) target = $region37
    $region36: #{tpu_custom_call.1} parent=1 // pred_region
      %78 = dma.done [#allocation6], 1024
    $region37: #{tpu_custom_call.1} parent=1 // pred_fallthru
      _
    // Predicated region
    $region38: #{tpu_custom_call.1} parent=1 // pred_check
      _
    $region39: #{tpu_custom_call.1} parent=1 // pred_check_branch
      %80 = sbr.rel (0) target = $region41
    $region40: #{tpu_custom_call.1} parent=1 // pred_region
      %81 = dma.done [#allocation9], 1024
    $region41: #{tpu_custom_call.1} parent=1 // pred_fallthru
      _
    %p83 = scmp.eq.s32.totalorder 0, 0
    // Predicated region
    $region42: #{tpu_custom_call.1} parent=1 // pred_check
      %p84 = pneg %p83
    $region43: #{tpu_custom_call.1} parent=1 // pred_check_branch
      %86 = sbr.rel (%p84) target = $region45
    $region44: #{tpu_custom_call.1} parent=1 // pred_region
      %v87 = vld [vmem:[%s4] sm:$0x1]
      %v89 = vlaneseq
      %v90 = vshrl.u32 %v89, 7
      %v91 = vsub.s32 0, %v90
      %v92 = vrot.slane %v87, %v91
      %94 = vst [vmem:[#allocation10] sm:$0xff] %v92
      %95 = vst [vmem:[#allocation10 + $0x8] sm:$0xff] %v92
      %v96 = vld [vmem:[%s5] sm:$0x1]
      %v98 = vlaneseq
      %v99 = vshrl.u32 %v98, 7
      %v100 = vsub.s32 0, %v99
      %v101 = vrot.slane %v96, %v100
      %103 = vst [vmem:[#allocation11] sm:$0xff] %v101
      %104 = vst [vmem:[#allocation11 + $0x8] sm:$0xff] %v101
    $region45: #{tpu_custom_call.1} parent=1 // pred_fallthru
      _
    %v105 = vld [vmem:[#allocation2] sm:$0xf]
    %v106 = vld [vmem:[#allocation2 + $0x4] sm:$0xf]
    %v107 = vld [vmem:[#allocation5] sm:$0xf]
    %v108 = vld [vmem:[#allocation5 + $0x4] sm:$0xf]
    %v109 = vld [vmem:[#allocation7] sm:$0xf]
    %v110 = vld [vmem:[#allocation7 + $0x4] sm:$0xf]
    %v111 = vld [vmem:[#allocation7 + $0x8] sm:$0xf]
    %v112 = vld [vmem:[#allocation7 + $0xc] sm:$0xf]
    %v113 = vld [vmem:[#allocation7 + $0x10] sm:$0xf]
    %v114 = vld [vmem:[#allocation7 + $0x14] sm:$0xf]
    %v115 = vld [vmem:[#allocation7 + $0x18] sm:$0xf]
    %v116 = vld [vmem:[#allocation7 + $0x1c] sm:$0xf]
    %v117 = vld [vmem:[#allocation7 + $0x20] sm:$0xf]
    %v118 = vld [vmem:[#allocation7 + $0x24] sm:$0xf]
    %v119 = vld [vmem:[#allocation7 + $0x28] sm:$0xf]
    %v120 = vld [vmem:[#allocation7 + $0x2c] sm:$0xf]
    %v121 = vld [vmem:[#allocation7 + $0x30] sm:$0xf]
    %v122 = vld [vmem:[#allocation7 + $0x34] sm:$0xf]
    %v123 = vld [vmem:[#allocation7 + $0x38] sm:$0xf]
    %v124 = vld [vmem:[#allocation7 + $0x3c] sm:$0xf]
    %v125 = vld [vmem:[#allocation8] sm:$0xf]
    %v126 = vld [vmem:[#allocation8 + $0x4] sm:$0xf]
    %v127 = vld [vmem:[#allocation8 + $0x8] sm:$0xf]
    %v128 = vld [vmem:[#allocation8 + $0xc] sm:$0xf]
    %v129 = vld [vmem:[#allocation8 + $0x10] sm:$0xf]
    %v130 = vld [vmem:[#allocation8 + $0x14] sm:$0xf]
    %v131 = vld [vmem:[#allocation8 + $0x18] sm:$0xf]
    %v132 = vld [vmem:[#allocation8 + $0x1c] sm:$0xf]
    %v133 = vld [vmem:[#allocation8 + $0x20] sm:$0xf]
    %v134 = vld [vmem:[#allocation8 + $0x24] sm:$0xf]
    %v135 = vld [vmem:[#allocation8 + $0x28] sm:$0xf]
    %v136 = vld [vmem:[#allocation8 + $0x2c] sm:$0xf]
    %v137 = vld [vmem:[#allocation8 + $0x30] sm:$0xf]
    %v138 = vld [vmem:[#allocation8 + $0x34] sm:$0xf]
    %v139 = vld [vmem:[#allocation8 + $0x38] sm:$0xf]
    %v140 = vld [vmem:[#allocation8 + $0x3c] sm:$0xf]
    %v141 = vadd.bf16 %v105, %v107
    %v142 = vadd.bf16 %v106, %v108
    %v143 = vadd.bf16 %v109, %v125
    %v144 = vadd.bf16 %v110, %v126
    %v145 = vadd.bf16 %v111, %v127
    %v146 = vadd.bf16 %v112, %v128
    %v147 = vadd.bf16 %v113, %v129
    %v148 = vadd.bf16 %v114, %v130
    %v149 = vadd.bf16 %v115, %v131
    %v150 = vadd.bf16 %v116, %v132
    %v151 = vadd.bf16 %v117, %v133
    %v152 = vadd.bf16 %v118, %v134
    %v153 = vadd.bf16 %v119, %v135
    %v154 = vadd.bf16 %v120, %v136
    %v155 = vadd.bf16 %v121, %v137
    %v156 = vadd.bf16 %v122, %v138
    %v157 = vadd.bf16 %v123, %v139
    %v158 = vadd.bf16 %v124, %v140
    %v161 = vunpack.c.l.b16 %v141
    %v162 = vunpack.c.l.b16 %v142
    %v163 = vpack.c.b16 %v162, %v161
    %v181 = vunpack.c.l.b16 %v143
    %v182 = vunpack.c.l.b16 %v144
    %v183 = vunpack.c.l.b16 %v145
    %v184 = vunpack.c.l.b16 %v146
    %v185 = vunpack.c.l.b16 %v147
    %v186 = vunpack.c.l.b16 %v148
    %v187 = vunpack.c.l.b16 %v149
    %v188 = vunpack.c.l.b16 %v150
    %v189 = vunpack.c.l.b16 %v151
    %v190 = vunpack.c.l.b16 %v152
    %v191 = vunpack.c.l.b16 %v153
    %v192 = vunpack.c.l.b16 %v154
    %v193 = vunpack.c.l.b16 %v155
    %v194 = vunpack.c.l.b16 %v156
    %v195 = vunpack.c.l.b16 %v157
    %v196 = vunpack.c.l.b16 %v158
    %v197 = vpack.c.b16 %v182, %v181
    %v198 = vpack.c.b16 %v184, %v183
    %v199 = vpack.c.b16 %v186, %v185
    %v200 = vpack.c.b16 %v188, %v187
    %v201 = vpack.c.b16 %v190, %v189
    %v202 = vpack.c.b16 %v192, %v191
    %v203 = vpack.c.b16 %v194, %v193
    %v204 = vpack.c.b16 %v196, %v195
    %213 = vmatprep.subr.bf16.mxu0 0
    %214 = vmatpush1.bf16.msra.mxu0 %v204
    %215 = vmatprep.subr.bf16.mxu0 0
    %216 = vmatpush1.bf16.msra.mxu0 %v203
    %217 = vmatprep.subr.bf16.mxu0 0
    %218 = vmatpush1.bf16.msra.mxu0 %v202
    %219 = vmatprep.subr.bf16.mxu0 0
    %220 = vmatpush1.bf16.msra.mxu0 %v201
    %221 = vmatprep.subr.bf16.mxu0 0
    %222 = vmatpush1.bf16.msra.mxu0 %v200
    %223 = vmatprep.subr.bf16.mxu0 0
    %224 = vmatpush1.bf16.msra.mxu0 %v199
    %225 = vmatprep.subr.bf16.mxu0 0
    %226 = vmatpush1.bf16.msra.mxu0 %v198
    %227 = vmatprep.subr.bf16.mxu0 0
    %228 = vmatpush1.bf16.msra.mxu0 %v197
    %229 = vmatprep.subr.bf16.mxu0 0
    %230 = vmatpush2.bf16.msra.mxu0 0
    %231 = vmatprep.subr.bf16.mxu0 0
    %232 = vmatpush2.bf16.msra.mxu0 0
    %233 = vmatprep.subr.bf16.mxu0 0
    %234 = vmatpush2.bf16.msra.mxu0 0
    %235 = vmatprep.subr.bf16.mxu0 0
    %236 = vmatpush2.bf16.msra.mxu0 0
    %237 = vmatprep.subr.bf16.mxu0 0
    %238 = vmatpush2.bf16.msra.mxu0 0
    %239 = vmatprep.subr.bf16.mxu0 0
    %240 = vmatpush2.bf16.msra.mxu0 0
    %241 = vmatprep.subr.bf16.mxu0 0
    %242 = vmatpush2.bf16.msra.mxu0 0
    %243 = vmatprep.subr.bf16.mxu0 0
    %244 = vmatpush2.bf16.msra.mxu0 0
    %245 = vmatprep.mubr.bf16.mxu0 0
    %246 = vmatmul.mubr.bf16.gmra.mxu0 %v163
    %v247 = vpop.f32.mrf.mxu0
    %v248 = vadd.f32 0.0, %v247
    %v249 = vpop.f32.mrf.mxu0
    %v250 = vpop.f32.mrf.mxu0
    %v251 = vadd.f32 0.0, %v250
    %v252 = vpop.f32.mrf.mxu0
    %253 = vdwg.mxu0
    %v254 = vld [vmem:[#allocation11] sm:$0xff]
    %v255 = vld [vmem:[#allocation11 + $0x8] sm:$0xff]
    %v256 = vadd.f32 %v254, %v248
    %v257 = vadd.f32 %v255, %v251
    %258 = vst [vmem:[#allocation11] sm:$0xff] %v256
    %259 = vst [vmem:[#allocation11 + $0x8] sm:$0xff] %v257
    %v262 = vunpack.c.l.b16 %v105
    %v263 = vunpack.c.l.b16 %v106
    %v264 = vpack.c.b16 %v263, %v262
    %v282 = vunpack.c.l.b16 %v109
    %v283 = vunpack.c.l.b16 %v110
    %v284 = vunpack.c.l.b16 %v111
    %v285 = vunpack.c.l.b16 %v112
    %v286 = vunpack.c.l.b16 %v113
    %v287 = vunpack.c.l.b16 %v114
    %v288 = vunpack.c.l.b16 %v115
    %v289 = vunpack.c.l.b16 %v116
    %v290 = vunpack.c.l.b16 %v117
    %v291 = vunpack.c.l.b16 %v118
    %v292 = vunpack.c.l.b16 %v119
    %v293 = vunpack.c.l.b16 %v120
    %v294 = vunpack.c.l.b16 %v121
    %v295 = vunpack.c.l.b16 %v122
    %v296 = vunpack.c.l.b16 %v123
    %v297 = vunpack.c.l.b16 %v124
    %v298 = vpack.c.b16 %v283, %v282
    %v299 = vpack.c.b16 %v285, %v284
    %v300 = vpack.c.b16 %v287, %v286
    %v301 = vpack.c.b16 %v289, %v288
    %v302 = vpack.c.b16 %v291, %v290
    %v303 = vpack.c.b16 %v293, %v292
    %v304 = vpack.c.b16 %v295, %v294
    %v305 = vpack.c.b16 %v297, %v296
    %314 = vmatprep.subr.bf16.mxu0 0
    %315 = vmatpush1.bf16.msra.mxu0 %v305
    %316 = vmatprep.subr.bf16.mxu0 0
    %317 = vmatpush1.bf16.msra.mxu0 %v304
    %318 = vmatprep.subr.bf16.mxu0 0
    %319 = vmatpush1.bf16.msra.mxu0 %v303
    %320 = vmatprep.subr.bf16.mxu0 0
    %321 = vmatpush1.bf16.msra.mxu0 %v302
    %322 = vmatprep.subr.bf16.mxu0 0
    %323 = vmatpush1.bf16.msra.mxu0 %v301
    %324 = vmatprep.subr.bf16.mxu0 0
    %325 = vmatpush1.bf16.msra.mxu0 %v300
    %326 = vmatprep.subr.bf16.mxu0 0
    %327 = vmatpush1.bf16.msra.mxu0 %v299
    %328 = vmatprep.subr.bf16.mxu0 0
    %329 = vmatpush1.bf16.msra.mxu0 %v298
    %330 = vmatprep.subr.bf16.mxu0 0
    %331 = vmatpush2.bf16.msra.mxu0 0
    %332 = vmatprep.subr.bf16.mxu0 0
    %333 = vmatpush2.bf16.msra.mxu0 0
    %334 = vmatprep.subr.bf16.mxu0 0
    %335 = vmatpush2.bf16.msra.mxu0 0
    %336 = vmatprep.subr.bf16.mxu0 0
    %337 = vmatpush2.bf16.msra.mxu0 0
    %338 = vmatprep.subr.bf16.mxu0 0
    %339 = vmatpush2.bf16.msra.mxu0 0
    %340 = vmatprep.subr.bf16.mxu0 0
    %341 = vmatpush2.bf16.msra.mxu0 0
    %342 = vmatprep.subr.bf16.mxu0 0
    %343 = vmatpush2.bf16.msra.mxu0 0
    %344 = vmatprep.subr.bf16.mxu0 0
    %345 = vmatpush2.bf16.msra.mxu0 0
    %346 = vmatprep.mubr.bf16.mxu0 0
    %347 = vmatmul.mubr.bf16.gmra.mxu0 %v264
    %v348 = vpop.f32.mrf.mxu0
    %v349 = vadd.f32 0.0, %v348
    %v350 = vpop.f32.mrf.mxu0
    %v351 = vpop.f32.mrf.mxu0
    %v352 = vadd.f32 0.0, %v351
    %v353 = vpop.f32.mrf.mxu0
    %354 = vdwg.mxu0
    %v355 = vld [vmem:[#allocation10] sm:$0xff]
    %v356 = vld [vmem:[#allocation10 + $0x8] sm:$0xff]
    %v357 = vadd.f32 %v355, %v349
    %v358 = vadd.f32 %v356, %v352
    %359 = vst [vmem:[#allocation10] sm:$0xff] %v357
    %360 = vst [vmem:[#allocation10 + $0x8] sm:$0xff] %v358
    %v361 = vld [vmem:[#allocation11] sm:$0xff]
    %v362 = vld [vmem:[#allocation11 + $0x8] sm:$0xff]
    %v363 = vsub.f32 %v361, %v349
    %v364 = vsub.f32 %v362, %v352
    %365 = vst [vmem:[#allocation11] sm:$0xff] %v363
    %366 = vst [vmem:[#allocation11 + $0x8] sm:$0xff] %v364
    %v369 = vunpack.c.l.b16 %v107
    %v370 = vunpack.c.l.b16 %v108
    %v371 = vpack.c.b16 %v370, %v369
    %v389 = vunpack.c.l.b16 %v125
    %v390 = vunpack.c.l.b16 %v126
    %v391 = vunpack.c.l.b16 %v127
    %v392 = vunpack.c.l.b16 %v128
    %v393 = vunpack.c.l.b16 %v129
    %v394 = vunpack.c.l.b16 %v130
    %v395 = vunpack.c.l.b16 %v131
    %v396 = vunpack.c.l.b16 %v132
    %v397 = vunpack.c.l.b16 %v133
    %v398 = vunpack.c.l.b16 %v134
    %v399 = vunpack.c.l.b16 %v135
    %v400 = vunpack.c.l.b16 %v136
    %v401 = vunpack.c.l.b16 %v137
    %v402 = vunpack.c.l.b16 %v138
    %v403 = vunpack.c.l.b16 %v139
    %v404 = vunpack.c.l.b16 %v140
    %v405 = vpack.c.b16 %v390, %v389
    %v406 = vpack.c.b16 %v392, %v391
    %v407 = vpack.c.b16 %v394, %v393
    %v408 = vpack.c.b16 %v396, %v395
    %v409 = vpack.c.b16 %v398, %v397
    %v410 = vpack.c.b16 %v400, %v399
    %v411 = vpack.c.b16 %v402, %v401
    %v412 = vpack.c.b16 %v404, %v403
    %421 = vmatprep.subr.bf16.mxu0 0
    %422 = vmatpush1.bf16.msra.mxu0 %v412
    %423 = vmatprep.subr.bf16.mxu0 0
    %424 = vmatpush1.bf16.msra.mxu0 %v411
    %425 = vmatprep.subr.bf16.mxu0 0
    %426 = vmatpush1.bf16.msra.mxu0 %v410
    %427 = vmatprep.subr.bf16.mxu0 0
    %428 = vmatpush1.bf16.msra.mxu0 %v409
    %429 = vmatprep.subr.bf16.mxu0 0
    %430 = vmatpush1.bf16.msra.mxu0 %v408
    %431 = vmatprep.subr.bf16.mxu0 0
    %432 = vmatpush1.bf16.msra.mxu0 %v407
    %433 = vmatprep.subr.bf16.mxu0 0
    %434 = vmatpush1.bf16.msra.mxu0 %v406
    %435 = vmatprep.subr.bf16.mxu0 0
    %436 = vmatpush1.bf16.msra.mxu0 %v405
    %437 = vmatprep.subr.bf16.mxu0 0
    %438 = vmatpush2.bf16.msra.mxu0 0
    %439 = vmatprep.subr.bf16.mxu0 0
    %440 = vmatpush2.bf16.msra.mxu0 0
    %441 = vmatprep.subr.bf16.mxu0 0
    %442 = vmatpush2.bf16.msra.mxu0 0
    %443 = vmatprep.subr.bf16.mxu0 0
    %444 = vmatpush2.bf16.msra.mxu0 0
    %445 = vmatprep.subr.bf16.mxu0 0
    %446 = vmatpush2.bf16.msra.mxu0 0
    %447 = vmatprep.subr.bf16.mxu0 0
    %448 = vmatpush2.bf16.msra.mxu0 0
    %449 = vmatprep.subr.bf16.mxu0 0
    %450 = vmatpush2.bf16.msra.mxu0 0
    %451 = vmatprep.subr.bf16.mxu0 0
    %452 = vmatpush2.bf16.msra.mxu0 0
    %453 = vmatprep.mubr.bf16.mxu0 0
    %454 = vmatmul.mubr.bf16.gmra.mxu0 %v371
    %v455 = vpop.f32.mrf.mxu0
    %v456 = vadd.f32 0.0, %v455
    %v457 = vpop.f32.mrf.mxu0
    %v458 = vpop.f32.mrf.mxu0
    %v459 = vadd.f32 0.0, %v458
    %v460 = vpop.f32.mrf.mxu0
    %461 = vdwg.mxu0
    %v462 = vld [vmem:[#allocation10] sm:$0xff]
    %v463 = vld [vmem:[#allocation10 + $0x8] sm:$0xff]
    %v464 = vsub.f32 %v462, %v456
    %v465 = vsub.f32 %v463, %v459
    %466 = vst [vmem:[#allocation10] sm:$0xff] %v464
    %467 = vst [vmem:[#allocation10 + $0x8] sm:$0xff] %v465
    %v468 = vld [vmem:[#allocation11] sm:$0xff]
    %v469 = vld [vmem:[#allocation11 + $0x8] sm:$0xff]
    %v470 = vsub.f32 %v468, %v456
    %v471 = vsub.f32 %v469, %v459
    %472 = vst [vmem:[#allocation11] sm:$0xff] %v470
    %473 = vst [vmem:[#allocation11 + $0x8] sm:$0xff] %v471
    // Predicated region
    $region46: #{tpu_custom_call.1} parent=1 // pred_check
      _
    $region47: #{tpu_custom_call.1} parent=1 // pred_check_branch
      %475 = sbr.rel (0) target = $region49
    $region48: #{tpu_custom_call.1} parent=1 // pred_region
      %s477 = ssub.s32 256, 256
      %478 = vsyncadd [#allocation4], %s477
      %s479 = sshll.u32 [#allocation10], 4
      %s480 = int_to_ptr.vmem [resolvable:$true] %s479
      %485 = dma.vmem_to_hbm [thread:$0]  %s480, 256, %s6, [#allocation4], 128, 128, 8
    $region49: #{tpu_custom_call.1} parent=1 // pred_fallthru
      _
    // Predicated region
    $region50: #{tpu_custom_call.1} parent=1 // pred_check
      _
    $region51: #{tpu_custom_call.1} parent=1 // pred_check_branch
      %487 = sbr.rel (0) target = $region53
    $region52: #{tpu_custom_call.1} parent=1 // pred_region
      %s489 = ssub.s32 256, 256
      %490 = vsyncadd [#allocation12], %s489
      %s491 = sshll.u32 [#allocation11], 4
      %s492 = int_to_ptr.vmem [resolvable:$true] %s491
      %497 = dma.vmem_to_hbm [thread:$0]  %s492, 256, %s7, [#allocation12], 128, 128, 8
    $region53: #{tpu_custom_call.1} parent=1 // pred_fallthru
      _
    // Predicated region
    $region54: #{tpu_custom_call.1} parent=1 // pred_check
      _
    $region55: #{tpu_custom_call.1} parent=1 // pred_check_branch
      %499 = sbr.rel (0) target = $region57
    $region56: #{tpu_custom_call.1} parent=1 // pred_region
      %500 = dma.done [#allocation4], 256
    $region57: #{tpu_custom_call.1} parent=1 // pred_fallthru
      _
    // Predicated region
    $region58: #{tpu_custom_call.1} parent=1 // pred_check
      _
    $region59: #{tpu_custom_call.1} parent=1 // pred_check_branch
      %502 = sbr.rel (0) target = $region61
    $region60: #{tpu_custom_call.1} parent=1 // pred_region
      %503 = dma.done [#allocation12], 256
    $region61: #{tpu_custom_call.1} parent=1 // pred_fallthru
      _
    %504 = vsyncpa [#allocation3], 1
    %505 = vsyncpa [#allocation6], 1
    %506 = vsyncpa [#allocation9], 1
    %507 = vsyncpa [#allocation4], 1
    %508 = vsyncpa [#allocation12], 1

</llo_original>
